<compile_context>
chip_gen: v7x
topology: tpu7x:2x2x1
jax: 0.10.0
libtpu: 0.0.40
codegen_flags: <defaults>
</compile_context>

<pallas_src>
import functools

import jax
import jax.numpy as jnp
import numpy as np
from jax.experimental import pallas as pl
from jax.experimental.pallas import tpu as pltpu


def _pyramid_kernel(x_ref, *out_refs, level_params, pooling, hierarchical):
    """Pool every pyramid level for one (batch-tile, channel-tile) block.

    x_ref:    (tb, H, W, tc) in VMEM -- channels on the lane axis.
    out_refs: one per level, shaped (tb, oh*ow, tc); one lane-dense store per
              level.  All slice offsets are static Python ints, so the body
              unrolls into straight-line VPU code.
    """
    if pooling == "max":
        op = jnp.max
        combine = jnp.maximum
    else:  # "avg"
        op = jnp.sum
        combine = jnp.add

    def pool_window(i0, kH, j0, kW):
        # Slice the *ref* (only one window live in vregs at a time), cast to
        # f32 once, reduce kH across vregs (VPU) then kW across sublanes.
        win = x_ref[:, i0:i0 + kH, j0:j0 + kW, :].astype(jnp.float32)
        r = op(win, axis=1)          # (tb, kW, tc)
        r = op(r, axis=1)            # (tb, tc)
        if pooling == "avg":
            r = r * (1.0 / (kH * kW))   # single constant reciprocal multiply
        return r

    def compute_level(kH, kW, sH, sW, oh, ow):
        return [[pool_window(i * sH, kH, j * sW, kW) for j in range(ow)]
                for i in range(oh)]

    def store_level(o_ref, grid_vals):
        flat = [v for row in grid_vals for v in row]
        stacked = jnp.stack(flat, axis=1)            # (tb, oh*ow, tc)
        o_ref[...] = stacked.astype(o_ref.dtype)     # one big lane-dense store

    levels = len(level_params)
    if hierarchical and levels > 1:
        # Read x once: finest level directly, then each coarser level by
        # combining 2x2 groups of the finer pooled map (exact because the
        # finer windows tile the coarser ones when H, W % 2**(levels-1) == 0).
        grid_vals = compute_level(*level_params[-1])
        store_level(out_refs[-1], grid_vals)
        for lvl in range(levels - 2, -1, -1):
            oh, ow = level_params[lvl][4], level_params[lvl][5]
            new_grid = []
            for i in range(oh):
                row = []
                for j in range(ow):
                    a = grid_vals[2 * i][2 * j]
                    b = grid_vals[2 * i][2 * j + 1]
                    c = grid_vals[2 * i + 1][2 * j]
                    d = grid_vals[2 * i + 1][2 * j + 1]
                    v = combine(combine(a, b), combine(c, d))
                    if pooling == "avg":
                        v = v * 0.25
                    row.append(v)
                new_grid.append(row)
            grid_vals = new_grid
            store_level(out_refs[lvl], grid_vals)
    else:
        for o_ref, params in zip(out_refs, level_params):
            store_level(o_ref, compute_level(*params))


def pyramid_pooling(x, levels: int = 1, pooling: str = "max"):
    """JAX/Pallas equivalent of PyramidPooling(F.max_pool2d / avg_pool2d, levels)(x)."""
    assert x.ndim == 4, "only 2-D spatial (NCHW) inputs are supported"
    # TODO(synk): the PyTorch module accepts arbitrary pooling callables and
    # N-D spatial inputs; only 2-D max/avg pooling is implemented here.
    B, C, H, W = x.shape

    level_params = []
    for l in range(levels):
        s = 2 ** l
        sH, sW = H // s, W // s                  # stride = floor(shape / 2**l)
        kH, kW = -(-H // s), -(-W // s)          # kernel = ceil(shape / 2**l)
        oh = (H - kH) // sH + 1
        ow = (W - kW) // sW + 1
        level_params.append((kH, kW, sH, sW, oh, ow))

    m = 1 << (levels - 1)
    hierarchical = levels > 1 and H % m == 0 and W % m == 0

    # Channels on the lane axis: NCHW -> NHWC (wrapper-side layout plumbing).
    x_nhwc = jnp.transpose(x, (0, 2, 3, 1))

    # Channel tile: 128 when C is a large multiple of 128, else the full C
    # (block dims must be 128-multiples or equal the full array dim).
    tc = 128 if (C > 128 and C % 128 == 0) else C
    # Batch tile: ~4 MiB input blocks so the BlockSpec pipeline can
    # double-buffer HBM<->VMEM within the default scoped-VMEM limit on all of
    # v5e / v6e / v7x.
    itemsize = jnp.dtype(x.dtype).itemsize
    per_sample = H * W * tc * itemsize
    tb = max(1, min(B, (4 * 1024 * 1024) // max(per_sample, 1)))
    while B % tb != 0:
        tb -= 1

    grid = (B // tb, C // tc)

    out_shapes = tuple(
        jax.ShapeDtypeStruct((B, oh * ow, C), x.dtype)
        for (_, _, _, _, oh, ow) in level_params
    )
    out_specs = tuple(
        pl.BlockSpec((tb, oh * ow, tc), lambda ib, ic: (ib, 0, ic))
        for (_, _, _, _, oh, ow) in level_params
    )

    kernel = functools.partial(
        _pyramid_kernel,
        level_params=tuple(level_params),
        pooling=pooling,
        hierarchical=hierarchical,
    )

    outs = pl.pallas_call(
        kernel,
        out_shape=out_shapes,
        grid=grid,
        in_specs=[pl.BlockSpec((tb, H, W, tc), lambda ib, ic: (ib, 0, 0, ic))],
        out_specs=out_specs,
        compiler_params=pltpu.CompilerParams(
            dimension_semantics=("parallel", "parallel"),
        ),
    )(x_nhwc)
    if not isinstance(outs, (tuple, list)):
        outs = (outs,)

    # Final PyTorch flatten order (feature = c*(oh*ow) + i*ow + j, levels
    # concatenated).  This pass only touches the small pooled outputs
    # (C * multiplier features per sample), never x.
    pieces = []
    for o, (_, _, _, _, oh, ow) in zip(outs, level_params):
        pieces.append(jnp.transpose(o, (0, 2, 1)).reshape(B, C * oh * ow))
    return jnp.concatenate(pieces, axis=-1)


def _reference_numpy(x, levels, pooling):
    """Independent numpy reference reproducing the PyTorch forward."""
    x = np.asarray(x)
    B, C, H, W = x.shape
    pyramid = []
    for l in range(levels):
        s = 2 ** l
        sH, sW = H // s, W // s
        kH, kW = -(-H // s), -(-W // s)
        oh = (H - kH) // sH + 1
        ow = (W - kW) // sW + 1
        out = np.empty((B, C, oh, ow), dtype=np.float32)
        for i in range(oh):
            for j in range(ow):
                win = x[:, :, i * sH:i * sH + kH, j * sW:j * sW + kW]
                out[:, :, i, j] = (
                    win.max(axis=(2, 3)) if pooling == "max" else win.mean(axis=(2, 3))
                )
        pyramid.append(out.reshape(B, -1))
    return np.concatenate(pyramid, axis=-1).astype(x.dtype)


if __name__ == "__main__":
    key = jax.random.PRNGKey(0)
    B, C, H, W = 2, 4, 16, 16
    levels = 3  # multiplier = (4**3 - 1) // 3 = 21 -> output (2, 4*21) = (2, 84)

    x = jax.random.normal(key, (B, C, H, W), dtype=jnp.float32)

    # Max pooling, 3 levels (hierarchical path).
    out = jax.block_until_ready(pyramid_pooling(x, levels=levels, pooling="max"))
    assert out.shape == (B, C * ((4 ** levels - 1) // 3)), out.shape
    np.testing.assert_allclose(
        np.asarray(out), _reference_numpy(x, levels, "max"), rtol=1e-6, atol=1e-6
    )

    # Average pooling, 3 levels (hierarchical, f32 accumulation).
    out_avg = jax.block_until_ready(pyramid_pooling(x, levels=levels, pooling="avg"))
    np.testing.assert_allclose(
        np.asarray(out_avg), _reference_numpy(x, levels, "avg"), rtol=1e-5, atol=1e-5
    )

    # Single level (direct, non-hierarchical path: global pooling).
    out1 = jax.block_until_ready(pyramid_pooling(x, levels=1, pooling="max"))
    np.testing.assert_allclose(
        np.asarray(out1), _reference_numpy(x, 1, "max"), rtol=1e-6, atol=1e-6
    )

    print("KERNEL_OK")
</pallas_src>

<mosaic_0001>
module attributes {stable_mosaic.version = 11 : i64} {
  func.func @_pyramid_kernel(%arg0: i32, %arg1: i32, %arg2: memref<2x16x16x4xf32, #tpu.memory_space<vmem>>, %arg3: memref<2x1x4xf32, #tpu.memory_space<vmem>>, %arg4: memref<2x4x4xf32, #tpu.memory_space<vmem>>, %arg5: memref<2x16x4xf32, #tpu.memory_space<vmem>>) attributes {dimension_semantics = [#tpu.dimension_semantics<parallel>, #tpu.dimension_semantics<parallel>], iteration_bounds = array<i64: 1, 1>, scalar_prefetch = 0 : i64, scratch_operands = 0 : i64, tpu.core_type = #tpu.core_type<tc>, window_params = [{transform_indices = @transform_0, window_bounds = array<i64: 2, 16, 16, 4>}, {transform_indices = @transform_1, window_bounds = array<i64: 2, 1, 4>}, {transform_indices = @transform_2, window_bounds = array<i64: 2, 4, 4>}, {transform_indices = @transform_3, window_bounds = array<i64: 2, 16, 4>}]} {
    %c0 = arith.constant 0 : index
    %c0_0 = arith.constant 0 : index
    %c0_1 = arith.constant 0 : index
    %c0_2 = arith.constant 0 : index
    %0 = vector.load %arg2[%c0, %c0_0, %c0_1, %c0_2] : memref<2x16x16x4xf32, #tpu.memory_space<vmem>>, vector<2x4x4x4xf32>
    %cst = arith.constant dense<0xFF800000> : vector<2x4x4xf32>
    %1 = vector.multi_reduction <maximumf>, %0, %cst [1] : vector<2x4x4x4xf32> to vector<2x4x4xf32>
    %cst_3 = arith.constant dense<0xFF800000> : vector<2x4xf32>
    %2 = vector.multi_reduction <maximumf>, %1, %cst_3 [1] : vector<2x4x4xf32> to vector<2x4xf32>
    %c0_4 = arith.constant 0 : index
    %c0_5 = arith.constant 0 : index
    %c4 = arith.constant 4 : index
    %c0_6 = arith.constant 0 : index
    %3 = vector.load %arg2[%c0_4, %c0_5, %c4, %c0_6] : memref<2x16x16x4xf32, #tpu.memory_space<vmem>>, vector<2x4x4x4xf32>
    %cst_7 = arith.constant dense<0xFF800000> : vector<2x4x4xf32>
    %4 = vector.multi_reduction <maximumf>, %3, %cst_7 [1] : vector<2x4x4x4xf32> to vector<2x4x4xf32>
    %cst_8 = arith.constant dense<0xFF800000> : vector<2x4xf32>
    %5 = vector.multi_reduction <maximumf>, %4, %cst_8 [1] : vector<2x4x4xf32> to vector<2x4xf32>
    %c0_9 = arith.constant 0 : index
    %c0_10 = arith.constant 0 : index
    %c8 = arith.constant 8 : index
    %c0_11 = arith.constant 0 : index
    %6 = vector.load %arg2[%c0_9, %c0_10, %c8, %c0_11] : memref<2x16x16x4xf32, #tpu.memory_space<vmem>>, vector<2x4x4x4xf32>
    %cst_12 = arith.constant dense<0xFF800000> : vector<2x4x4xf32>
    %7 = vector.multi_reduction <maximumf>, %6, %cst_12 [1] : vector<2x4x4x4xf32> to vector<2x4x4xf32>
    %cst_13 = arith.constant dense<0xFF800000> : vector<2x4xf32>
    %8 = vector.multi_reduction <maximumf>, %7, %cst_13 [1] : vector<2x4x4xf32> to vector<2x4xf32>
    %c0_14 = arith.constant 0 : index
    %c0_15 = arith.constant 0 : index
    %c12 = arith.constant 12 : index
    %c0_16 = arith.constant 0 : index
    %9 = vector.load %arg2[%c0_14, %c0_15, %c12, %c0_16] : memref<2x16x16x4xf32, #tpu.memory_space<vmem>>, vector<2x4x4x4xf32>
    %cst_17 = arith.constant dense<0xFF800000> : vector<2x4x4xf32>
    %10 = vector.multi_reduction <maximumf>, %9, %cst_17 [1] : vector<2x4x4x4xf32> to vector<2x4x4xf32>
    %cst_18 = arith.constant dense<0xFF800000> : vector<2x4xf32>
    %11 = vector.multi_reduction <maximumf>, %10, %cst_18 [1] : vector<2x4x4xf32> to vector<2x4xf32>
    %c0_19 = arith.constant 0 : index
    %c4_20 = arith.constant 4 : index
    %c0_21 = arith.constant 0 : index
    %c0_22 = arith.constant 0 : index
    %12 = vector.load %arg2[%c0_19, %c4_20, %c0_21, %c0_22] : memref<2x16x16x4xf32, #tpu.memory_space<vmem>>, vector<2x4x4x4xf32>
    %cst_23 = arith.constant dense<0xFF800000> : vector<2x4x4xf32>
    %13 = vector.multi_reduction <maximumf>, %12, %cst_23 [1] : vector<2x4x4x4xf32> to vector<2x4x4xf32>
    %cst_24 = arith.constant dense<0xFF800000> : vector<2x4xf32>
    %14 = vector.multi_reduction <maximumf>, %13, %cst_24 [1] : vector<2x4x4xf32> to vector<2x4xf32>
    %c0_25 = arith.constant 0 : index
    %c4_26 = arith.constant 4 : index
    %c4_27 = arith.constant 4 : index
    %c0_28 = arith.constant 0 : index
    %15 = vector.load %arg2[%c0_25, %c4_26, %c4_27, %c0_28] : memref<2x16x16x4xf32, #tpu.memory_space<vmem>>, vector<2x4x4x4xf32>
    %cst_29 = arith.constant dense<0xFF800000> : vector<2x4x4xf32>
    %16 = vector.multi_reduction <maximumf>, %15, %cst_29 [1] : vector<2x4x4x4xf32> to vector<2x4x4xf32>
    %cst_30 = arith.constant dense<0xFF800000> : vector<2x4xf32>
    %17 = vector.multi_reduction <maximumf>, %16, %cst_30 [1] : vector<2x4x4xf32> to vector<2x4xf32>
    %c0_31 = arith.constant 0 : index
    %c4_32 = arith.constant 4 : index
    %c8_33 = arith.constant 8 : index
    %c0_34 = arith.constant 0 : index
    %18 = vector.load %arg2[%c0_31, %c4_32, %c8_33, %c0_34] : memref<2x16x16x4xf32, #tpu.memory_space<vmem>>, vector<2x4x4x4xf32>
    %cst_35 = arith.constant dense<0xFF800000> : vector<2x4x4xf32>
    %19 = vector.multi_reduction <maximumf>, %18, %cst_35 [1] : vector<2x4x4x4xf32> to vector<2x4x4xf32>
    %cst_36 = arith.constant dense<0xFF800000> : vector<2x4xf32>
    %20 = vector.multi_reduction <maximumf>, %19, %cst_36 [1] : vector<2x4x4xf32> to vector<2x4xf32>
    %c0_37 = arith.constant 0 : index
    %c4_38 = arith.constant 4 : index
    %c12_39 = arith.constant 12 : index
    %c0_40 = arith.constant 0 : index
    %21 = vector.load %arg2[%c0_37, %c4_38, %c12_39, %c0_40] : memref<2x16x16x4xf32, #tpu.memory_space<vmem>>, vector<2x4x4x4xf32>
    %cst_41 = arith.constant dense<0xFF800000> : vector<2x4x4xf32>
    %22 = vector.multi_reduction <maximumf>, %21, %cst_41 [1] : vector<2x4x4x4xf32> to vector<2x4x4xf32>
    %cst_42 = arith.constant dense<0xFF800000> : vector<2x4xf32>
    %23 = vector.multi_reduction <maximumf>, %22, %cst_42 [1] : vector<2x4x4xf32> to vector<2x4xf32>
    %c0_43 = arith.constant 0 : index
    %c8_44 = arith.constant 8 : index
    %c0_45 = arith.constant 0 : index
    %c0_46 = arith.constant 0 : index
    %24 = vector.load %arg2[%c0_43, %c8_44, %c0_45, %c0_46] : memref<2x16x16x4xf32, #tpu.memory_space<vmem>>, vector<2x4x4x4xf32>
    %cst_47 = arith.constant dense<0xFF800000> : vector<2x4x4xf32>
    %25 = vector.multi_reduction <maximumf>, %24, %cst_47 [1] : vector<2x4x4x4xf32> to vector<2x4x4xf32>
    %cst_48 = arith.constant dense<0xFF800000> : vector<2x4xf32>
    %26 = vector.multi_reduction <maximumf>, %25, %cst_48 [1] : vector<2x4x4xf32> to vector<2x4xf32>
    %c0_49 = arith.constant 0 : index
    %c8_50 = arith.constant 8 : index
    %c4_51 = arith.constant 4 : index
    %c0_52 = arith.constant 0 : index
    %27 = vector.load %arg2[%c0_49, %c8_50, %c4_51, %c0_52] : memref<2x16x16x4xf32, #tpu.memory_space<vmem>>, vector<2x4x4x4xf32>
    %cst_53 = arith.constant dense<0xFF800000> : vector<2x4x4xf32>
    %28 = vector.multi_reduction <maximumf>, %27, %cst_53 [1] : vector<2x4x4x4xf32> to vector<2x4x4xf32>
    %cst_54 = arith.constant dense<0xFF800000> : vector<2x4xf32>
    %29 = vector.multi_reduction <maximumf>, %28, %cst_54 [1] : vector<2x4x4xf32> to vector<2x4xf32>
    %c0_55 = arith.constant 0 : index
    %c8_56 = arith.constant 8 : index
    %c8_57 = arith.constant 8 : index
    %c0_58 = arith.constant 0 : index
    %30 = vector.load %arg2[%c0_55, %c8_56, %c8_57, %c0_58] : memref<2x16x16x4xf32, #tpu.memory_space<vmem>>, vector<2x4x4x4xf32>
    %cst_59 = arith.constant dense<0xFF800000> : vector<2x4x4xf32>
    %31 = vector.multi_reduction <maximumf>, %30, %cst_59 [1] : vector<2x4x4x4xf32> to vector<2x4x4xf32>
    %cst_60 = arith.constant dense<0xFF800000> : vector<2x4xf32>
    %32 = vector.multi_reduction <maximumf>, %31, %cst_60 [1] : vector<2x4x4xf32> to vector<2x4xf32>
    %c0_61 = arith.constant 0 : index
    %c8_62 = arith.constant 8 : index
    %c12_63 = arith.constant 12 : index
    %c0_64 = arith.constant 0 : index
    %33 = vector.load %arg2[%c0_61, %c8_62, %c12_63, %c0_64] : memref<2x16x16x4xf32, #tpu.memory_space<vmem>>, vector<2x4x4x4xf32>
    %cst_65 = arith.constant dense<0xFF800000> : vector<2x4x4xf32>
    %34 = vector.multi_reduction <maximumf>, %33, %cst_65 [1] : vector<2x4x4x4xf32> to vector<2x4x4xf32>
    %cst_66 = arith.constant dense<0xFF800000> : vector<2x4xf32>
    %35 = vector.multi_reduction <maximumf>, %34, %cst_66 [1] : vector<2x4x4xf32> to vector<2x4xf32>
    %c0_67 = arith.constant 0 : index
    %c12_68 = arith.constant 12 : index
    %c0_69 = arith.constant 0 : index
    %c0_70 = arith.constant 0 : index
    %36 = vector.load %arg2[%c0_67, %c12_68, %c0_69, %c0_70] : memref<2x16x16x4xf32, #tpu.memory_space<vmem>>, vector<2x4x4x4xf32>
    %cst_71 = arith.constant dense<0xFF800000> : vector<2x4x4xf32>
    %37 = vector.multi_reduction <maximumf>, %36, %cst_71 [1] : vector<2x4x4x4xf32> to vector<2x4x4xf32>
    %cst_72 = arith.constant dense<0xFF800000> : vector<2x4xf32>
    %38 = vector.multi_reduction <maximumf>, %37, %cst_72 [1] : vector<2x4x4xf32> to vector<2x4xf32>
    %c0_73 = arith.constant 0 : index
    %c12_74 = arith.constant 12 : index
    %c4_75 = arith.constant 4 : index
    %c0_76 = arith.constant 0 : index
    %39 = vector.load %arg2[%c0_73, %c12_74, %c4_75, %c0_76] : memref<2x16x16x4xf32, #tpu.memory_space<vmem>>, vector<2x4x4x4xf32>
    %cst_77 = arith.constant dense<0xFF800000> : vector<2x4x4xf32>
    %40 = vector.multi_reduction <maximumf>, %39, %cst_77 [1] : vector<2x4x4x4xf32> to vector<2x4x4xf32>
    %cst_78 = arith.constant dense<0xFF800000> : vector<2x4xf32>
    %41 = vector.multi_reduction <maximumf>, %40, %cst_78 [1] : vector<2x4x4xf32> to vector<2x4xf32>
    %c0_79 = arith.constant 0 : index
    %c12_80 = arith.constant 12 : index
    %c8_81 = arith.constant 8 : index
    %c0_82 = arith.constant 0 : index
    %42 = vector.load %arg2[%c0_79, %c12_80, %c8_81, %c0_82] : memref<2x16x16x4xf32, #tpu.memory_space<vmem>>, vector<2x4x4x4xf32>
    %cst_83 = arith.constant dense<0xFF800000> : vector<2x4x4xf32>
    %43 = vector.multi_reduction <maximumf>, %42, %cst_83 [1] : vector<2x4x4x4xf32> to vector<2x4x4xf32>
    %cst_84 = arith.constant dense<0xFF800000> : vector<2x4xf32>
    %44 = vector.multi_reduction <maximumf>, %43, %cst_84 [1] : vector<2x4x4xf32> to vector<2x4xf32>
    %c0_85 = arith.constant 0 : index
    %c12_86 = arith.constant 12 : index
    %c12_87 = arith.constant 12 : index
    %c0_88 = arith.constant 0 : index
    %45 = vector.load %arg2[%c0_85, %c12_86, %c12_87, %c0_88] : memref<2x16x16x4xf32, #tpu.memory_space<vmem>>, vector<2x4x4x4xf32>
    %cst_89 = arith.constant dense<0xFF800000> : vector<2x4x4xf32>
    %46 = vector.multi_reduction <maximumf>, %45, %cst_89 [1] : vector<2x4x4x4xf32> to vector<2x4x4xf32>
    %cst_90 = arith.constant dense<0xFF800000> : vector<2x4xf32>
    %47 = vector.multi_reduction <maximumf>, %46, %cst_90 [1] : vector<2x4x4xf32> to vector<2x4xf32>
    %48 = vector.shape_cast %2 : vector<2x4xf32> to vector<2x1x4xf32>
    %49 = vector.shape_cast %5 : vector<2x4xf32> to vector<2x1x4xf32>
    %50 = vector.shape_cast %8 : vector<2x4xf32> to vector<2x1x4xf32>
    %51 = vector.shape_cast %11 : vector<2x4xf32> to vector<2x1x4xf32>
    %52 = vector.shape_cast %14 : vector<2x4xf32> to vector<2x1x4xf32>
    %53 = vector.shape_cast %17 : vector<2x4xf32> to vector<2x1x4xf32>
    %54 = vector.shape_cast %20 : vector<2x4xf32> to vector<2x1x4xf32>
    %55 = vector.shape_cast %23 : vector<2x4xf32> to vector<2x1x4xf32>
    %56 = vector.shape_cast %26 : vector<2x4xf32> to vector<2x1x4xf32>
    %57 = vector.shape_cast %29 : vector<2x4xf32> to vector<2x1x4xf32>
    %58 = vector.shape_cast %32 : vector<2x4xf32> to vector<2x1x4xf32>
    %59 = vector.shape_cast %35 : vector<2x4xf32> to vector<2x1x4xf32>
    %60 = vector.shape_cast %38 : vector<2x4xf32> to vector<2x1x4xf32>
    %61 = vector.shape_cast %41 : vector<2x4xf32> to vector<2x1x4xf32>
    %62 = vector.shape_cast %44 : vector<2x4xf32> to vector<2x1x4xf32>
    %63 = vector.shape_cast %47 : vector<2x4xf32> to vector<2x1x4xf32>
    %64 = tpu.concatenate %48, %49, %50, %51, %52, %53, %54, %55, %56, %57, %58, %59, %60, %61, %62, %63 in 1 : vector<2x1x4xf32>, vector<2x1x4xf32>, vector<2x1x4xf32>, vector<2x1x4xf32>, vector<2x1x4xf32>, vector<2x1x4xf32>, vector<2x1x4xf32>, vector<2x1x4xf32>, vector<2x1x4xf32>, vector<2x1x4xf32>, vector<2x1x4xf32>, vector<2x1x4xf32>, vector<2x1x4xf32>, vector<2x1x4xf32>, vector<2x1x4xf32>, vector<2x1x4xf32> -> vector<2x16x4xf32>
    %c0_91 = arith.constant 0 : index
    %c0_92 = arith.constant 0 : index
    %c0_93 = arith.constant 0 : index
    %65 = vector.load %arg5[%c0_91, %c0_92, %c0_93] : memref<2x16x4xf32, #tpu.memory_space<vmem>>, vector<2x16x4xf32>
    tpu.vector_store %arg5[%c0_91, %c0_92, %c0_93], %64 {strides = array<i32>} : memref<2x16x4xf32, #tpu.memory_space<vmem>>, vector<2x16x4xf32>,
    %66 = arith.maximumf %2, %5 : vector<2x4xf32>
    %67 = arith.maximumf %14, %17 : vector<2x4xf32>
    %68 = arith.maximumf %66, %67 : vector<2x4xf32>
    %69 = arith.maximumf %8, %11 : vector<2x4xf32>
    %70 = arith.maximumf %20, %23 : vector<2x4xf32>
    %71 = arith.maximumf %69, %70 : vector<2x4xf32>
    %72 = arith.maximumf %26, %29 : vector<2x4xf32>
    %73 = arith.maximumf %38, %41 : vector<2x4xf32>
    %74 = arith.maximumf %72, %73 : vector<2x4xf32>
    %75 = arith.maximumf %32, %35 : vector<2x4xf32>
    %76 = arith.maximumf %44, %47 : vector<2x4xf32>
    %77 = arith.maximumf %75, %76 : vector<2x4xf32>
    %78 = vector.shape_cast %68 : vector<2x4xf32> to vector<2x1x4xf32>
    %79 = vector.shape_cast %71 : vector<2x4xf32> to vector<2x1x4xf32>
    %80 = vector.shape_cast %74 : vector<2x4xf32> to vector<2x1x4xf32>
    %81 = vector.shape_cast %77 : vector<2x4xf32> to vector<2x1x4xf32>
    %82 = tpu.concatenate %78, %79, %80, %81 in 1 : vector<2x1x4xf32>, vector<2x1x4xf32>, vector<2x1x4xf32>, vector<2x1x4xf32> -> vector<2x4x4xf32>
    %c0_94 = arith.constant 0 : index
    %c0_95 = arith.constant 0 : index
    %c0_96 = arith.constant 0 : index
    %83 = vector.load %arg4[%c0_94, %c0_95, %c0_96] : memref<2x4x4xf32, #tpu.memory_space<vmem>>, vector<2x4x4xf32>
    tpu.vector_store %arg4[%c0_94, %c0_95, %c0_96], %82 {strides = array<i32>} : memref<2x4x4xf32, #tpu.memory_space<vmem>>, vector<2x4x4xf32>,
    %84 = arith.maximumf %68, %71 : vector<2x4xf32>
    %85 = arith.maximumf %74, %77 : vector<2x4xf32>
    %86 = arith.maximumf %84, %85 : vector<2x4xf32>
    %87 = vector.shape_cast %86 : vector<2x4xf32> to vector<2x1x4xf32>
    %c0_97 = arith.constant 0 : index
    %c0_98 = arith.constant 0 : index
    %c0_99 = arith.constant 0 : index
    %88 = vector.load %arg3[%c0_97, %c0_98, %c0_99] : memref<2x1x4xf32, #tpu.memory_space<vmem>>, vector<2x1x4xf32>
    tpu.vector_store %arg3[%c0_97, %c0_98, %c0_99], %87 {strides = array<i32>} : memref<2x1x4xf32, #tpu.memory_space<vmem>>, vector<2x1x4xf32>,
    return
  }
  func.func @transform_0(%arg0: i32, %arg1: i32) -> (i32, i32, i32, i32) {
    %c0_i32 = arith.constant 0 : i32
    %c0_i32_0 = arith.constant 0 : i32
    %c0_i32_1 = arith.constant 0 : i32
    return %arg0, %c0_i32, %c0_i32_0, %arg1 : i32, i32, i32, i32
  }
  func.func @transform_1(%arg0: i32, %arg1: i32) -> (i32, i32, i32) {
    %c0_i32 = arith.constant 0 : i32
    %c0_i32_0 = arith.constant 0 : i32
    return %arg0, %c0_i32, %arg1 : i32, i32, i32
  }
  func.func @transform_2(%arg0: i32, %arg1: i32) -> (i32, i32, i32) {
    %c0_i32 = arith.constant 0 : i32
    %c0_i32_0 = arith.constant 0 : i32
    return %arg0, %c0_i32, %arg1 : i32, i32, i32
  }
  func.func @transform_3(%arg0: i32, %arg1: i32) -> (i32, i32, i32) {
    %c0_i32 = arith.constant 0 : i32
    %c0_i32_0 = arith.constant 0 : i32
    return %arg0, %c0_i32, %arg1 : i32, i32, i32
  }
}

</mosaic_0001>

<llo_original>
// kernel: tpu_custom_call.1
$region0: #{tpu_custom_call.1}
  #allocation0 [shape = 'u32[]', space=smem, size = 0x4, offset = 0x4, fixed_abs, tag = 'smem constant byte address 0x4 - core index']
  #allocation1 [shape = 'u32[144,128]{1,0:T(1,128)}', space=vmem, size = 0x12000, scoped, tag = 'internal scratch']
  %s0 = inlined_call_operand.vmem [shape: f32[2,16,16,4], index: 0, kind: input, shape index: {}]
  %s1 = inlined_call_operand.hbm [shape: f32[2,1,4], index: 1, kind: output, shape index: {0}]
  %s2 = inlined_call_operand.hbm [shape: f32[2,4,4], index: 2, kind: output, shape index: {1}]
  %s3 = inlined_call_operand.vmem [shape: f32[2,16,4], index: 3, kind: output, shape index: {2}]
  %4 = xla_tuple %s1, %s2, %s3
  %s5 = sld [smem:[#allocation0]]
  $region30: #{tpu_custom_call.1} parent=0
    _
  %s7 = ssub.s32 1, %s5
  %s8 = scalar_select 0, %s7, %s5
  $region1: #{tpu_custom_call.1} parent=0
    #allocation2 [shape = 'u8[1024]{0}', space=vmem, size = 0x400, scoped, tag = 'output window, operand 0, single buffered']
    #allocation3 [shape = 's32[1]{0}', space=sflag, size = 0x4, scoped, tag = 'scoped memory for tpu_custom_call.1']
    #allocation4 [shape = 'u8[4096]{0}', space=vmem, size = 0x1000, scoped, tag = 'output window, operand 1, single buffered']
    #allocation5 [shape = 's32[1]{0}', space=sflag, size = 0x4, scoped, tag = 'scoped memory for tpu_custom_call.1']
    %9 = vsyncpa [#allocation3], 0
    %10 = vsyncpa [#allocation5], 0
    // Predicated region
    $region2: #{tpu_custom_call.1} parent=1 // pred_check
      _
    $region3: #{tpu_custom_call.1} parent=1 // pred_check_branch
      %12 = sbr.rel (0) target = $region5
    $region4: #{tpu_custom_call.1} parent=1 // pred_region
      _
    $region5: #{tpu_custom_call.1} parent=1 // pred_fallthru
      _
    %v13 = vld [vmem:[%s0] sm:$0xf]
    %v14 = vld [vmem:[%s0 + $0x10] sm:$0xf]
    %v15 = vld [vmem:[%s0 + $0x20] sm:$0xf]
    %v16 = vld [vmem:[%s0 + $0x30] sm:$0xf]
    %v17 = vld [vmem:[%s0 + $0x100] sm:$0xf]
    %v18 = vld [vmem:[%s0 + $0x110] sm:$0xf]
    %v19 = vld [vmem:[%s0 + $0x120] sm:$0xf]
    %v20 = vld [vmem:[%s0 + $0x130] sm:$0xf]
    %vm21 = vcmask 27648
    %v22 = vsel %vm21, %v13, -inf
    %v23 = vsel %vm21, %v14, -inf
    %v24 = vsel %vm21, %v15, -inf
    %v25 = vmax.f32 %v22, %v24
    %v26 = vsel %vm21, %v16, -inf
    %v27 = vmax.f32 %v23, %v26
    %v28 = vmax.f32 %v25, %v27
    %v29 = vsel %vm21, %v17, -inf
    %v30 = vsel %vm21, %v18, -inf
    %v31 = vsel %vm21, %v19, -inf
    %v32 = vmax.f32 %v29, %v31
    %v33 = vsel %vm21, %v20, -inf
    %v34 = vmax.f32 %v30, %v33
    %v35 = vmax.f32 %v32, %v34
    %v36 = vsel %vm21, %v28, -inf
    %v37 = vrot.slane %v36, 4
    %v38 = vmax.f32 %v36, %v37
    %v39 = vrot.slane %v38, 2
    %v40 = vmax.f32 %v38, %v39
    %v41 = vrot.slane %v40, 1
    %v42 = vmax.f32 %v40, %v41
    %v43 = vsel %vm21, %v35, -inf
    %v44 = vrot.slane %v43, 4
    %v45 = vmax.f32 %v43, %v44
    %v46 = vrot.slane %v45, 2
    %v47 = vmax.f32 %v45, %v46
    %v48 = vrot.slane %v47, 1
    %v49 = vmax.f32 %v47, %v48
    %v50 = vld [vmem:[%s0 + $0x4] sm:$0xf]
    %v51 = vld [vmem:[%s0 + $0x14] sm:$0xf]
    %v52 = vld [vmem:[%s0 + $0x24] sm:$0xf]
    %v53 = vld [vmem:[%s0 + $0x34] sm:$0xf]
    %v54 = vld [vmem:[%s0 + $0x104] sm:$0xf]
    %v55 = vld [vmem:[%s0 + $0x114] sm:$0xf]
    %v56 = vld [vmem:[%s0 + $0x124] sm:$0xf]
    %v57 = vld [vmem:[%s0 + $0x134] sm:$0xf]
    %v58 = vsel %vm21, %v50, -inf
    %v59 = vsel %vm21, %v51, -inf
    %v60 = vsel %vm21, %v52, -inf
    %v61 = vmax.f32 %v58, %v60
    %v62 = vsel %vm21, %v53, -inf
    %v63 = vmax.f32 %v59, %v62
    %v64 = vmax.f32 %v61, %v63
    %v65 = vsel %vm21, %v54, -inf
    %v66 = vsel %vm21, %v55, -inf
    %v67 = vsel %vm21, %v56, -inf
    %v68 = vmax.f32 %v65, %v67
    %v69 = vsel %vm21, %v57, -inf
    %v70 = vmax.f32 %v66, %v69
    %v71 = vmax.f32 %v68, %v70
    %v72 = vsel %vm21, %v64, -inf
    %v73 = vrot.slane %v72, 4
    %v74 = vmax.f32 %v72, %v73
    %v75 = vrot.slane %v74, 2
    %v76 = vmax.f32 %v74, %v75
    %v77 = vrot.slane %v76, 1
    %v78 = vmax.f32 %v76, %v77
    %v79 = vsel %vm21, %v71, -inf
    %v80 = vrot.slane %v79, 4
    %v81 = vmax.f32 %v79, %v80
    %v82 = vrot.slane %v81, 2
    %v83 = vmax.f32 %v81, %v82
    %v84 = vrot.slane %v83, 1
    %v85 = vmax.f32 %v83, %v84
    %v86 = vld [vmem:[%s0 + $0x8] sm:$0xf]
    %v87 = vld [vmem:[%s0 + $0x18] sm:$0xf]
    %v88 = vld [vmem:[%s0 + $0x28] sm:$0xf]
    %v89 = vld [vmem:[%s0 + $0x38] sm:$0xf]
    %v90 = vld [vmem:[%s0 + $0x108] sm:$0xf]
    %v91 = vld [vmem:[%s0 + $0x118] sm:$0xf]
    %v92 = vld [vmem:[%s0 + $0x128] sm:$0xf]
    %v93 = vld [vmem:[%s0 + $0x138] sm:$0xf]
    %v94 = vsel %vm21, %v86, -inf
    %v95 = vsel %vm21, %v87, -inf
    %v96 = vsel %vm21, %v88, -inf
    %v97 = vmax.f32 %v94, %v96
    %v98 = vsel %vm21, %v89, -inf
    %v99 = vmax.f32 %v95, %v98
    %v100 = vmax.f32 %v97, %v99
    %v101 = vsel %vm21, %v90, -inf
    %v102 = vsel %vm21, %v91, -inf
    %v103 = vsel %vm21, %v92, -inf
    %v104 = vmax.f32 %v101, %v103
    %v105 = vsel %vm21, %v93, -inf
    %v106 = vmax.f32 %v102, %v105
    %v107 = vmax.f32 %v104, %v106
    %v108 = vsel %vm21, %v100, -inf
    %v109 = vrot.slane %v108, 4
    %v110 = vmax.f32 %v108, %v109
    %v111 = vrot.slane %v110, 2
    %v112 = vmax.f32 %v110, %v111
    %v113 = vrot.slane %v112, 1
    %v114 = vmax.f32 %v112, %v113
    %v115 = vsel %vm21, %v107, -inf
    %v116 = vrot.slane %v115, 4
    %v117 = vmax.f32 %v115, %v116
    %v118 = vrot.slane %v117, 2
    %v119 = vmax.f32 %v117, %v118
    %v120 = vrot.slane %v119, 1
    %v121 = vmax.f32 %v119, %v120
    %v122 = vld [vmem:[%s0 + $0xc] sm:$0xf]
    %v123 = vld [vmem:[%s0 + $0x1c] sm:$0xf]
    %v124 = vld [vmem:[%s0 + $0x2c] sm:$0xf]
    %v125 = vld [vmem:[%s0 + $0x3c] sm:$0xf]
    %v126 = vld [vmem:[%s0 + $0x10c] sm:$0xf]
    %v127 = vld [vmem:[%s0 + $0x11c] sm:$0xf]
    %v128 = vld [vmem:[%s0 + $0x12c] sm:$0xf]
    %v129 = vld [vmem:[%s0 + $0x13c] sm:$0xf]
    %v130 = vsel %vm21, %v122, -inf
    %v131 = vsel %vm21, %v123, -inf
    %v132 = vsel %vm21, %v124, -inf
    %v133 = vmax.f32 %v130, %v132
    %v134 = vsel %vm21, %v125, -inf
    %v135 = vmax.f32 %v131, %v134
    %v136 = vmax.f32 %v133, %v135
    %v137 = vsel %vm21, %v126, -inf
    %v138 = vsel %vm21, %v127, -inf
    %v139 = vsel %vm21, %v128, -inf
    %v140 = vmax.f32 %v137, %v139
    %v141 = vsel %vm21, %v129, -inf
    %v142 = vmax.f32 %v138, %v141
    %v143 = vmax.f32 %v140, %v142
    %v144 = vsel %vm21, %v136, -inf
    %v145 = vrot.slane %v144, 4
    %v146 = vmax.f32 %v144, %v145
    %v147 = vrot.slane %v146, 2
    %v148 = vmax.f32 %v146, %v147
    %v149 = vrot.slane %v148, 1
    %v150 = vmax.f32 %v148, %v149
    %v151 = vsel %vm21, %v143, -inf
    %v152 = vrot.slane %v151, 4
    %v153 = vmax.f32 %v151, %v152
    %v154 = vrot.slane %v153, 2
    %v155 = vmax.f32 %v153, %v154
    %v156 = vrot.slane %v155, 1
    %v157 = vmax.f32 %v155, %v156
    %s158 = scalar_lea.vmem %s0, 64
    %v159 = vld [vmem:[%s158] sm:$0xf]
    %v160 = vld [vmem:[%s158 + $0x10] sm:$0xf]
    %v161 = vld [vmem:[%s158 + $0x20] sm:$0xf]
    %v162 = vld [vmem:[%s158 + $0x30] sm:$0xf]
    %v163 = vld [vmem:[%s158 + $0x100] sm:$0xf]
    %v164 = vld [vmem:[%s158 + $0x110] sm:$0xf]
    %v165 = vld [vmem:[%s158 + $0x120] sm:$0xf]
    %v166 = vld [vmem:[%s158 + $0x130] sm:$0xf]
    %v167 = vsel %vm21, %v159, -inf
    %v168 = vsel %vm21, %v160, -inf
    %v169 = vsel %vm21, %v161, -inf
    %v170 = vmax.f32 %v167, %v169
    %v171 = vsel %vm21, %v162, -inf
    %v172 = vmax.f32 %v168, %v171
    %v173 = vmax.f32 %v170, %v172
    %v174 = vsel %vm21, %v163, -inf
    %v175 = vsel %vm21, %v164, -inf
    %v176 = vsel %vm21, %v165, -inf
    %v177 = vmax.f32 %v174, %v176
    %v178 = vsel %vm21, %v166, -inf
    %v179 = vmax.f32 %v175, %v178
    %v180 = vmax.f32 %v177, %v179
    %v181 = vsel %vm21, %v173, -inf
    %v182 = vrot.slane %v181, 4
    %v183 = vmax.f32 %v181, %v182
    %v184 = vrot.slane %v183, 2
    %v185 = vmax.f32 %v183, %v184
    %v186 = vrot.slane %v185, 1
    %v187 = vmax.f32 %v185, %v186
    %v188 = vsel %vm21, %v180, -inf
    %v189 = vrot.slane %v188, 4
    %v190 = vmax.f32 %v188, %v189
    %v191 = vrot.slane %v190, 2
    %v192 = vmax.f32 %v190, %v191
    %v193 = vrot.slane %v192, 1
    %v194 = vmax.f32 %v192, %v193
    %v195 = vld [vmem:[%s158 + $0x4] sm:$0xf]
    %v196 = vld [vmem:[%s158 + $0x14] sm:$0xf]
    %v197 = vld [vmem:[%s158 + $0x24] sm:$0xf]
    %v198 = vld [vmem:[%s158 + $0x34] sm:$0xf]
    %v199 = vld [vmem:[%s158 + $0x104] sm:$0xf]
    %v200 = vld [vmem:[%s158 + $0x114] sm:$0xf]
    %v201 = vld [vmem:[%s158 + $0x124] sm:$0xf]
    %v202 = vld [vmem:[%s158 + $0x134] sm:$0xf]
    %v203 = vsel %vm21, %v195, -inf
    %v204 = vsel %vm21, %v196, -inf
    %v205 = vsel %vm21, %v197, -inf
    %v206 = vmax.f32 %v203, %v205
    %v207 = vsel %vm21, %v198, -inf
    %v208 = vmax.f32 %v204, %v207
    %v209 = vmax.f32 %v206, %v208
    %v210 = vsel %vm21, %v199, -inf
    %v211 = vsel %vm21, %v200, -inf
    %v212 = vsel %vm21, %v201, -inf
    %v213 = vmax.f32 %v210, %v212
    %v214 = vsel %vm21, %v202, -inf
    %v215 = vmax.f32 %v211, %v214
    %v216 = vmax.f32 %v213, %v215
    %v217 = vsel %vm21, %v209, -inf
    %v218 = vrot.slane %v217, 4
    %v219 = vmax.f32 %v217, %v218
    %v220 = vrot.slane %v219, 2
    %v221 = vmax.f32 %v219, %v220
    %v222 = vrot.slane %v221, 1
    %v223 = vmax.f32 %v221, %v222
    %v224 = vsel %vm21, %v216, -inf
    %v225 = vrot.slane %v224, 4
    %v226 = vmax.f32 %v224, %v225
    %v227 = vrot.slane %v226, 2
    %v228 = vmax.f32 %v226, %v227
    %v229 = vrot.slane %v228, 1
    %v230 = vmax.f32 %v228, %v229
    %v231 = vld [vmem:[%s158 + $0x8] sm:$0xf]
    %v232 = vld [vmem:[%s158 + $0x18] sm:$0xf]
    %v233 = vld [vmem:[%s158 + $0x28] sm:$0xf]
    %v234 = vld [vmem:[%s158 + $0x38] sm:$0xf]
    %v235 = vld [vmem:[%s158 + $0x108] sm:$0xf]
    %v236 = vld [vmem:[%s158 + $0x118] sm:$0xf]
    %v237 = vld [vmem:[%s158 + $0x128] sm:$0xf]
    %v238 = vld [vmem:[%s158 + $0x138] sm:$0xf]
    %v239 = vsel %vm21, %v231, -inf
    %v240 = vsel %vm21, %v232, -inf
    %v241 = vsel %vm21, %v233, -inf
    %v242 = vmax.f32 %v239, %v241
    %v243 = vsel %vm21, %v234, -inf
    %v244 = vmax.f32 %v240, %v243
    %v245 = vmax.f32 %v242, %v244
    %v246 = vsel %vm21, %v235, -inf
    %v247 = vsel %vm21, %v236, -inf
    %v248 = vsel %vm21, %v237, -inf
    %v249 = vmax.f32 %v246, %v248
    %v250 = vsel %vm21, %v238, -inf
    %v251 = vmax.f32 %v247, %v250
    %v252 = vmax.f32 %v249, %v251
    %v253 = vsel %vm21, %v245, -inf
    %v254 = vrot.slane %v253, 4
    %v255 = vmax.f32 %v253, %v254
    %v256 = vrot.slane %v255, 2
    %v257 = vmax.f32 %v255, %v256
    %v258 = vrot.slane %v257, 1
    %v259 = vmax.f32 %v257, %v258
    %v260 = vsel %vm21, %v252, -inf
    %v261 = vrot.slane %v260, 4
    %v262 = vmax.f32 %v260, %v261
    %v263 = vrot.slane %v262, 2
    %v264 = vmax.f32 %v262, %v263
    %v265 = vrot.slane %v264, 1
    %v266 = vmax.f32 %v264, %v265
    %v267 = vld [vmem:[%s158 + $0xc] sm:$0xf]
    %v268 = vld [vmem:[%s158 + $0x1c] sm:$0xf]
    %v269 = vld [vmem:[%s158 + $0x2c] sm:$0xf]
    %v270 = vld [vmem:[%s158 + $0x3c] sm:$0xf]
    %v271 = vld [vmem:[%s158 + $0x10c] sm:$0xf]
    %v272 = vld [vmem:[%s158 + $0x11c] sm:$0xf]
    %v273 = vld [vmem:[%s158 + $0x12c] sm:$0xf]
    %v274 = vld [vmem:[%s158 + $0x13c] sm:$0xf]
    %v275 = vsel %vm21, %v267, -inf
    %v276 = vsel %vm21, %v268, -inf
    %v277 = vsel %vm21, %v269, -inf
    %v278 = vmax.f32 %v275, %v277
    %v279 = vsel %vm21, %v270, -inf
    %v280 = vmax.f32 %v276, %v279
    %v281 = vmax.f32 %v278, %v280
    %v282 = vsel %vm21, %v271, -inf
    %v283 = vsel %vm21, %v272, -inf
    %v284 = vsel %vm21, %v273, -inf
    %v285 = vmax.f32 %v282, %v284
    %v286 = vsel %vm21, %v274, -inf
    %v287 = vmax.f32 %v283, %v286
    %v288 = vmax.f32 %v285, %v287
    %v289 = vsel %vm21, %v281, -inf
    %v290 = vrot.slane %v289, 4
    %v291 = vmax.f32 %v289, %v290
    %v292 = vrot.slane %v291, 2
    %v293 = vmax.f32 %v291, %v292
    %v294 = vrot.slane %v293, 1
    %v295 = vmax.f32 %v293, %v294
    %v296 = vsel %vm21, %v288, -inf
    %v297 = vrot.slane %v296, 4
    %v298 = vmax.f32 %v296, %v297
    %v299 = vrot.slane %v298, 2
    %v300 = vmax.f32 %v298, %v299
    %v301 = vrot.slane %v300, 1
    %v302 = vmax.f32 %v300, %v301
    %s303 = scalar_lea.vmem %s0, 128
    %v304 = vld [vmem:[%s303] sm:$0xf]
    %v305 = vld [vmem:[%s303 + $0x10] sm:$0xf]
    %v306 = vld [vmem:[%s303 + $0x20] sm:$0xf]
    %v307 = vld [vmem:[%s303 + $0x30] sm:$0xf]
    %v308 = vld [vmem:[%s303 + $0x100] sm:$0xf]
    %v309 = vld [vmem:[%s303 + $0x110] sm:$0xf]
    %v310 = vld [vmem:[%s303 + $0x120] sm:$0xf]
    %v311 = vld [vmem:[%s303 + $0x130] sm:$0xf]
    %v312 = vsel %vm21, %v304, -inf
    %v313 = vsel %vm21, %v305, -inf
    %v314 = vsel %vm21, %v306, -inf
    %v315 = vmax.f32 %v312, %v314
    %v316 = vsel %vm21, %v307, -inf
    %v317 = vmax.f32 %v313, %v316
    %v318 = vmax.f32 %v315, %v317
    %v319 = vsel %vm21, %v308, -inf
    %v320 = vsel %vm21, %v309, -inf
    %v321 = vsel %vm21, %v310, -inf
    %v322 = vmax.f32 %v319, %v321
    %v323 = vsel %vm21, %v311, -inf
    %v324 = vmax.f32 %v320, %v323
    %v325 = vmax.f32 %v322, %v324
    %v326 = vsel %vm21, %v318, -inf
    %v327 = vrot.slane %v326, 4
    %v328 = vmax.f32 %v326, %v327
    %v329 = vrot.slane %v328, 2
    %v330 = vmax.f32 %v328, %v329
    %v331 = vrot.slane %v330, 1
    %v332 = vmax.f32 %v330, %v331
    %v333 = vsel %vm21, %v325, -inf
    %v334 = vrot.slane %v333, 4
    %v335 = vmax.f32 %v333, %v334
    %v336 = vrot.slane %v335, 2
    %v337 = vmax.f32 %v335, %v336
    %v338 = vrot.slane %v337, 1
    %v339 = vmax.f32 %v337, %v338
    %v340 = vld [vmem:[%s303 + $0x4] sm:$0xf]
    %v341 = vld [vmem:[%s303 + $0x14] sm:$0xf]
    %v342 = vld [vmem:[%s303 + $0x24] sm:$0xf]
    %v343 = vld [vmem:[%s303 + $0x34] sm:$0xf]
    %v344 = vld [vmem:[%s303 + $0x104] sm:$0xf]
    %v345 = vld [vmem:[%s303 + $0x114] sm:$0xf]
    %v346 = vld [vmem:[%s303 + $0x124] sm:$0xf]
    %v347 = vld [vmem:[%s303 + $0x134] sm:$0xf]
    %v348 = vsel %vm21, %v340, -inf
    %v349 = vsel %vm21, %v341, -inf
    %v350 = vsel %vm21, %v342, -inf
    %v351 = vmax.f32 %v348, %v350
    %v352 = vsel %vm21, %v343, -inf
    %v353 = vmax.f32 %v349, %v352
    %v354 = vmax.f32 %v351, %v353
    %v355 = vsel %vm21, %v344, -inf
    %v356 = vsel %vm21, %v345, -inf
    %v357 = vsel %vm21, %v346, -inf
    %v358 = vmax.f32 %v355, %v357
    %v359 = vsel %vm21, %v347, -inf
    %v360 = vmax.f32 %v356, %v359
    %v361 = vmax.f32 %v358, %v360
    %v362 = vsel %vm21, %v354, -inf
    %v363 = vrot.slane %v362, 4
    %v364 = vmax.f32 %v362, %v363
    %v365 = vrot.slane %v364, 2
    %v366 = vmax.f32 %v364, %v365
    %v367 = vrot.slane %v366, 1
    %v368 = vmax.f32 %v366, %v367
    %v369 = vsel %vm21, %v361, -inf
    %v370 = vrot.slane %v369, 4
    %v371 = vmax.f32 %v369, %v370
    %v372 = vrot.slane %v371, 2
    %v373 = vmax.f32 %v371, %v372
    %v374 = vrot.slane %v373, 1
    %v375 = vmax.f32 %v373, %v374
    %v376 = vld [vmem:[%s303 + $0x8] sm:$0xf]
    %v377 = vld [vmem:[%s303 + $0x18] sm:$0xf]
    %v378 = vld [vmem:[%s303 + $0x28] sm:$0xf]
    %v379 = vld [vmem:[%s303 + $0x38] sm:$0xf]
    %v380 = vld [vmem:[%s303 + $0x108] sm:$0xf]
    %v381 = vld [vmem:[%s303 + $0x118] sm:$0xf]
    %v382 = vld [vmem:[%s303 + $0x128] sm:$0xf]
    %v383 = vld [vmem:[%s303 + $0x138] sm:$0xf]
    %v384 = vsel %vm21, %v376, -inf
    %v385 = vsel %vm21, %v377, -inf
    %v386 = vsel %vm21, %v378, -inf
    %v387 = vmax.f32 %v384, %v386
    %v388 = vsel %vm21, %v379, -inf
    %v389 = vmax.f32 %v385, %v388
    %v390 = vmax.f32 %v387, %v389
    %v391 = vsel %vm21, %v380, -inf
    %v392 = vsel %vm21, %v381, -inf
    %v393 = vsel %vm21, %v382, -inf
    %v394 = vmax.f32 %v391, %v393
    %v395 = vsel %vm21, %v383, -inf
    %v396 = vmax.f32 %v392, %v395
    %v397 = vmax.f32 %v394, %v396
    %v398 = vsel %vm21, %v390, -inf
    %v399 = vrot.slane %v398, 4
    %v400 = vmax.f32 %v398, %v399
    %v401 = vrot.slane %v400, 2
    %v402 = vmax.f32 %v400, %v401
    %v403 = vrot.slane %v402, 1
    %v404 = vmax.f32 %v402, %v403
    %v405 = vsel %vm21, %v397, -inf
    %v406 = vrot.slane %v405, 4
    %v407 = vmax.f32 %v405, %v406
    %v408 = vrot.slane %v407, 2
    %v409 = vmax.f32 %v407, %v408
    %v410 = vrot.slane %v409, 1
    %v411 = vmax.f32 %v409, %v410
    %v412 = vld [vmem:[%s303 + $0xc] sm:$0xf]
    %v413 = vld [vmem:[%s303 + $0x1c] sm:$0xf]
    %v414 = vld [vmem:[%s303 + $0x2c] sm:$0xf]
    %v415 = vld [vmem:[%s303 + $0x3c] sm:$0xf]
    %v416 = vld [vmem:[%s303 + $0x10c] sm:$0xf]
    %v417 = vld [vmem:[%s303 + $0x11c] sm:$0xf]
    %v418 = vld [vmem:[%s303 + $0x12c] sm:$0xf]
    %v419 = vld [vmem:[%s303 + $0x13c] sm:$0xf]
    %v420 = vsel %vm21, %v412, -inf
    %v421 = vsel %vm21, %v413, -inf
    %v422 = vsel %vm21, %v414, -inf
    %v423 = vmax.f32 %v420, %v422
    %v424 = vsel %vm21, %v415, -inf
    %v425 = vmax.f32 %v421, %v424
    %v426 = vmax.f32 %v423, %v425
    %v427 = vsel %vm21, %v416, -inf
    %v428 = vsel %vm21, %v417, -inf
    %v429 = vsel %vm21, %v418, -inf
    %v430 = vmax.f32 %v427, %v429
    %v431 = vsel %vm21, %v419, -inf
    %v432 = vmax.f32 %v428, %v431
    %v433 = vmax.f32 %v430, %v432
    %v434 = vsel %vm21, %v426, -inf
    %v435 = vrot.slane %v434, 4
    %v436 = vmax.f32 %v434, %v435
    %v437 = vrot.slane %v436, 2
    %v438 = vmax.f32 %v436, %v437
    %v439 = vrot.slane %v438, 1
    %v440 = vmax.f32 %v438, %v439
    %v441 = vsel %vm21, %v433, -inf
    %v442 = vrot.slane %v441, 4
    %v443 = vmax.f32 %v441, %v442
    %v444 = vrot.slane %v443, 2
    %v445 = vmax.f32 %v443, %v444
    %v446 = vrot.slane %v445, 1
    %v447 = vmax.f32 %v445, %v446
    %s448 = scalar_lea.vmem %s0, 192
    %v449 = vld [vmem:[%s448] sm:$0xf]
    %v450 = vld [vmem:[%s448 + $0x10] sm:$0xf]
    %v451 = vld [vmem:[%s448 + $0x20] sm:$0xf]
    %v452 = vld [vmem:[%s448 + $0x30] sm:$0xf]
    %v453 = vld [vmem:[%s448 + $0x100] sm:$0xf]
    %v454 = vld [vmem:[%s448 + $0x110] sm:$0xf]
    %v455 = vld [vmem:[%s448 + $0x120] sm:$0xf]
    %v456 = vld [vmem:[%s448 + $0x130] sm:$0xf]
    %v457 = vsel %vm21, %v449, -inf
    %v458 = vsel %vm21, %v450, -inf
    %v459 = vsel %vm21, %v451, -inf
    %v460 = vmax.f32 %v457, %v459
    %v461 = vsel %vm21, %v452, -inf
    %v462 = vmax.f32 %v458, %v461
    %v463 = vmax.f32 %v460, %v462
    %v464 = vsel %vm21, %v453, -inf
    %v465 = vsel %vm21, %v454, -inf
    %v466 = vsel %vm21, %v455, -inf
    %v467 = vmax.f32 %v464, %v466
    %v468 = vsel %vm21, %v456, -inf
    %v469 = vmax.f32 %v465, %v468
    %v470 = vmax.f32 %v467, %v469
    %v471 = vsel %vm21, %v463, -inf
    %v472 = vrot.slane %v471, 4
    %v473 = vmax.f32 %v471, %v472
    %v474 = vrot.slane %v473, 2
    %v475 = vmax.f32 %v473, %v474
    %v476 = vrot.slane %v475, 1
    %v477 = vmax.f32 %v475, %v476
    %v478 = vsel %vm21, %v470, -inf
    %v479 = vrot.slane %v478, 4
    %v480 = vmax.f32 %v478, %v479
    %v481 = vrot.slane %v480, 2
    %v482 = vmax.f32 %v480, %v481
    %v483 = vrot.slane %v482, 1
    %v484 = vmax.f32 %v482, %v483
    %v485 = vld [vmem:[%s448 + $0x4] sm:$0xf]
    %v486 = vld [vmem:[%s448 + $0x14] sm:$0xf]
    %v487 = vld [vmem:[%s448 + $0x24] sm:$0xf]
    %v488 = vld [vmem:[%s448 + $0x34] sm:$0xf]
    %v489 = vld [vmem:[%s448 + $0x104] sm:$0xf]
    %v490 = vld [vmem:[%s448 + $0x114] sm:$0xf]
    %v491 = vld [vmem:[%s448 + $0x124] sm:$0xf]
    %v492 = vld [vmem:[%s448 + $0x134] sm:$0xf]
    %v493 = vsel %vm21, %v485, -inf
    %v494 = vsel %vm21, %v486, -inf
    %v495 = vsel %vm21, %v487, -inf
    %v496 = vmax.f32 %v493, %v495
    %v497 = vsel %vm21, %v488, -inf
    %v498 = vmax.f32 %v494, %v497
    %v499 = vmax.f32 %v496, %v498
    %v500 = vsel %vm21, %v489, -inf
    %v501 = vsel %vm21, %v490, -inf
    %v502 = vsel %vm21, %v491, -inf
    %v503 = vmax.f32 %v500, %v502
    %v504 = vsel %vm21, %v492, -inf
    %v505 = vmax.f32 %v501, %v504
    %v506 = vmax.f32 %v503, %v505
    %v507 = vsel %vm21, %v499, -inf
    %v508 = vrot.slane %v507, 4
    %v509 = vmax.f32 %v507, %v508
    %v510 = vrot.slane %v509, 2
    %v511 = vmax.f32 %v509, %v510
    %v512 = vrot.slane %v511, 1
    %v513 = vmax.f32 %v511, %v512
    %v514 = vsel %vm21, %v506, -inf
    %v515 = vrot.slane %v514, 4
    %v516 = vmax.f32 %v514, %v515
    %v517 = vrot.slane %v516, 2
    %v518 = vmax.f32 %v516, %v517
    %v519 = vrot.slane %v518, 1
    %v520 = vmax.f32 %v518, %v519
    %v521 = vld [vmem:[%s448 + $0x8] sm:$0xf]
    %v522 = vld [vmem:[%s448 + $0x18] sm:$0xf]
    %v523 = vld [vmem:[%s448 + $0x28] sm:$0xf]
    %v524 = vld [vmem:[%s448 + $0x38] sm:$0xf]
    %v525 = vld [vmem:[%s448 + $0x108] sm:$0xf]
    %v526 = vld [vmem:[%s448 + $0x118] sm:$0xf]
    %v527 = vld [vmem:[%s448 + $0x128] sm:$0xf]
    %v528 = vld [vmem:[%s448 + $0x138] sm:$0xf]
    %v529 = vsel %vm21, %v521, -inf
    %v530 = vsel %vm21, %v522, -inf
    %v531 = vsel %vm21, %v523, -inf
    %v532 = vmax.f32 %v529, %v531
    %v533 = vsel %vm21, %v524, -inf
    %v534 = vmax.f32 %v530, %v533
    %v535 = vmax.f32 %v532, %v534
    %v536 = vsel %vm21, %v525, -inf
    %v537 = vsel %vm21, %v526, -inf
    %v538 = vsel %vm21, %v527, -inf
    %v539 = vmax.f32 %v536, %v538
    %v540 = vsel %vm21, %v528, -inf
    %v541 = vmax.f32 %v537, %v540
    %v542 = vmax.f32 %v539, %v541
    %v543 = vsel %vm21, %v535, -inf
    %v544 = vrot.slane %v543, 4
    %v545 = vmax.f32 %v543, %v544
    %v546 = vrot.slane %v545, 2
    %v547 = vmax.f32 %v545, %v546
    %v548 = vrot.slane %v547, 1
    %v549 = vmax.f32 %v547, %v548
    %v550 = vsel %vm21, %v542, -inf
    %v551 = vrot.slane %v550, 4
    %v552 = vmax.f32 %v550, %v551
    %v553 = vrot.slane %v552, 2
    %v554 = vmax.f32 %v552, %v553
    %v555 = vrot.slane %v554, 1
    %v556 = vmax.f32 %v554, %v555
    %v557 = vld [vmem:[%s448 + $0xc] sm:$0xf]
    %v558 = vld [vmem:[%s448 + $0x1c] sm:$0xf]
    %v559 = vld [vmem:[%s448 + $0x2c] sm:$0xf]
    %v560 = vld [vmem:[%s448 + $0x3c] sm:$0xf]
    %v561 = vld [vmem:[%s448 + $0x10c] sm:$0xf]
    %v562 = vld [vmem:[%s448 + $0x11c] sm:$0xf]
    %v563 = vld [vmem:[%s448 + $0x12c] sm:$0xf]
    %v564 = vld [vmem:[%s448 + $0x13c] sm:$0xf]
    %v565 = vsel %vm21, %v557, -inf
    %v566 = vsel %vm21, %v558, -inf
    %v567 = vsel %vm21, %v559, -inf
    %v568 = vmax.f32 %v565, %v567
    %v569 = vsel %vm21, %v560, -inf
    %v570 = vmax.f32 %v566, %v569
    %v571 = vmax.f32 %v568, %v570
    %v572 = vsel %vm21, %v561, -inf
    %v573 = vsel %vm21, %v562, -inf
    %v574 = vsel %vm21, %v563, -inf
    %v575 = vmax.f32 %v572, %v574
    %v576 = vsel %vm21, %v564, -inf
    %v577 = vmax.f32 %v573, %v576
    %v578 = vmax.f32 %v575, %v577
    %v579 = vsel %vm21, %v571, -inf
    %v580 = vrot.slane %v579, 4
    %v581 = vmax.f32 %v579, %v580
    %v582 = vrot.slane %v581, 2
    %v583 = vmax.f32 %v581, %v582
    %v584 = vrot.slane %v583, 1
    %v585 = vmax.f32 %v583, %v584
    %v586 = vsel %vm21, %v578, -inf
    %v587 = vrot.slane %v586, 4
    %v588 = vmax.f32 %v586, %v587
    %v589 = vrot.slane %v588, 2
    %v590 = vmax.f32 %v588, %v589
    %v591 = vrot.slane %v590, 1
    %v592 = vmax.f32 %v590, %v591
    %vm593 = vcmask 1040384
    %v594 = vsel %vm593, %v42, %v78
    %v595 = vsel %vm593, %v49, %v85
    %vm596 = vcmask 1041408
    %v597 = vsel %vm596, %v594, %v114
    %v598 = vsel %vm596, %v595, %v121
    %vm599 = vcmask 1042432
    %v600 = vsel %vm599, %v597, %v150
    %v601 = vsel %vm599, %v598, %v157
    %vm602 = vcmask 1043456
    %v603 = vsel %vm602, %v600, %v187
    %v604 = vsel %vm602, %v601, %v194
    %vm605 = vcmask 1044480
    %v606 = vsel %vm605, %v603, %v223
    %v607 = vsel %vm605, %v604, %v230
    %vm608 = vcmask 1045504
    %v609 = vsel %vm608, %v606, %v259
    %v610 = vsel %vm608, %v607, %v266
    %vm611 = vcmask 1046528
    %v612 = vsel %vm611, %v609, %v295
    %v613 = vsel %vm611, %v610, %v302
    %v614 = vsel %vm593, %v332, %v368
    %v615 = vsel %vm593, %v339, %v375
    %v616 = vsel %vm596, %v614, %v404
    %v617 = vsel %vm596, %v615, %v411
    %v618 = vsel %vm599, %v616, %v440
    %v619 = vsel %vm599, %v617, %v447
    %v620 = vsel %vm602, %v618, %v477
    %v621 = vsel %vm602, %v619, %v484
    %v622 = vsel %vm605, %v620, %v513
    %v623 = vsel %vm605, %v621, %v520
    %v624 = vsel %vm608, %v622, %v549
    %v625 = vsel %vm608, %v623, %v556
    %v626 = vsel %vm611, %v624, %v585
    %v627 = vsel %vm611, %v625, %v592
    %vm628 = vcmask 31744
    %629 = vst.msk [vmem:[%s3] sm:$0xff] %vm628, %v612
    %630 = vst.msk [vmem:[%s3 + $0x8] sm:$0xff] %vm628, %v626
    %631 = vst.msk [vmem:[%s3 + $0x10] sm:$0xff] %vm628, %v613
    %632 = vst.msk [vmem:[%s3 + $0x18] sm:$0xff] %vm628, %v627
    %v633 = vmax.f32 %v42, %v78
    %v634 = vmax.f32 %v49, %v85
    %v635 = vmax.f32 %v187, %v223
    %v636 = vmax.f32 %v194, %v230
    %v637 = vmax.f32 %v633, %v635
    %v638 = vmax.f32 %v634, %v636
    %v639 = vmax.f32 %v114, %v150
    %v640 = vmax.f32 %v121, %v157
    %v641 = vmax.f32 %v259, %v295
    %v642 = vmax.f32 %v266, %v302
    %v643 = vmax.f32 %v639, %v641
    %v644 = vmax.f32 %v640, %v642
    %v645 = vmax.f32 %v332, %v368
    %v646 = vmax.f32 %v339, %v375
    %v647 = vmax.f32 %v477, %v513
    %v648 = vmax.f32 %v484, %v520
    %v649 = vmax.f32 %v645, %v647
    %v650 = vmax.f32 %v646, %v648
    %v651 = vmax.f32 %v404, %v440
    %v652 = vmax.f32 %v411, %v447
    %v653 = vmax.f32 %v549, %v585
    %v654 = vmax.f32 %v556, %v592
    %v655 = vmax.f32 %v651, %v653
    %v656 = vmax.f32 %v652, %v654
    %v657 = vsel %vm593, %v637, %v643
    %v658 = vsel %vm593, %v638, %v644
    %v659 = vsel %vm596, %v657, %v649
    %v660 = vsel %vm596, %v658, %v650
    %v661 = vsel %vm599, %v659, %v655
    %v662 = vsel %vm599, %v660, %v656
    %663 = vst.msk [vmem:[#allocation4] sm:$0xf] %vm21, %v661
    %664 = vst.msk [vmem:[#allocation4 + $0x4] sm:$0xf] %vm21, %v662
    %v665 = vmax.f32 %v637, %v643
    %v666 = vmax.f32 %v638, %v644
    %v667 = vmax.f32 %v649, %v655
    %v668 = vmax.f32 %v650, %v656
    %v669 = vmax.f32 %v665, %v667
    %v670 = vmax.f32 %v666, %v668
    %vm671 = vcmask 24576
    %672 = vst.msk [vmem:[#allocation2] sm:$0x1] %vm671, %v669
    %673 = vst.msk [vmem:[#allocation2 + $0x1] sm:$0x1] %vm671, %v670
    // Predicated region
    $region6: #{tpu_custom_call.1} parent=1 // pred_check
      _
    $region7: #{tpu_custom_call.1} parent=1 // pred_check_branch
      %675 = sbr.rel (0) target = $region9
    $region8: #{tpu_custom_call.1} parent=1 // pred_region
      %s677 = ssub.s32 32, 32
      %678 = vsyncadd [#allocation3], %s677
      %s679 = sshll.u32 [#allocation2], 4
      %s680 = int_to_ptr.vmem [resolvable:$true] %s679
      %685 = dma.vmem_to_hbm [thread:$0]  %s680, 32, %s1, [#allocation3], 16, 16, 1
    $region9: #{tpu_custom_call.1} parent=1 // pred_fallthru
      _
    // Predicated region
    $region10: #{tpu_custom_call.1} parent=1 // pred_check
      _
    $region11: #{tpu_custom_call.1} parent=1 // pred_check_branch
      %687 = sbr.rel (0) target = $region13
    $region12: #{tpu_custom_call.1} parent=1 // pred_region
      %s689 = ssub.s32 128, 128
      %690 = vsyncadd [#allocation5], %s689
      %s691 = sshll.u32 [#allocation4], 4
      %s692 = int_to_ptr.vmem [resolvable:$true] %s691
      %697 = dma.vmem_to_hbm [thread:$0]  %s692, 128, %s2, [#allocation5], 64, 64, 4
    $region13: #{tpu_custom_call.1} parent=1 // pred_fallthru
      _
    // Predicated region
    $region14: #{tpu_custom_call.1} parent=1 // pred_check
      _
    $region15: #{tpu_custom_call.1} parent=1 // pred_check_branch
      %699 = sbr.rel (0) target = $region17
    $region16: #{tpu_custom_call.1} parent=1 // pred_region
      _
    $region17: #{tpu_custom_call.1} parent=1 // pred_fallthru
      _
    // Predicated region
    $region18: #{tpu_custom_call.1} parent=1 // pred_check
      _
    $region19: #{tpu_custom_call.1} parent=1 // pred_check_branch
      %701 = sbr.rel (0) target = $region21
    $region20: #{tpu_custom_call.1} parent=1 // pred_region
      %702 = dma.done [#allocation3], 32
    $region21: #{tpu_custom_call.1} parent=1 // pred_fallthru
      _
    // Predicated region
    $region22: #{tpu_custom_call.1} parent=1 // pred_check
      _
    $region23: #{tpu_custom_call.1} parent=1 // pred_check_branch
      %704 = sbr.rel (0) target = $region25
    $region24: #{tpu_custom_call.1} parent=1 // pred_region
      %705 = dma.done [#allocation5], 128
    $region25: #{tpu_custom_call.1} parent=1 // pred_fallthru
      _
    // Predicated region
    $region26: #{tpu_custom_call.1} parent=1 // pred_check
      _
    $region27: #{tpu_custom_call.1} parent=1 // pred_check_branch
      %707 = sbr.rel (0) target = $region29
    $region28: #{tpu_custom_call.1} parent=1 // pred_region
      _
    $region29: #{tpu_custom_call.1} parent=1 // pred_fallthru
      _
    %708 = vsyncpa [#allocation3], 1
    %709 = vsyncpa [#allocation5], 1

</llo_original>
